<compile_context>
chip_gen: v5e
topology: v5e:2x2
jax: 0.10.0
libtpu: 0.0.40
codegen_flags: <defaults>
</compile_context>

<pallas_src>
import jax
import jax.numpy as jnp
from jax.experimental import pallas as pl
from jax.experimental.pallas import tpu as pltpu

IN_F = 7      # fc1 in_features
H1 = 16       # fc1 out_features
H2 = 8        # fc2 out_features
OUT_F = 4     # fc3 out_features


def mlp_kernel(x_ref, w1_ref, b1_ref, w2_ref, b2_ref, w3_ref, b3_ref, o_ref):
    # x tile: (TB, 7) f32; weights bf16; biases f32 (1, N); output (TB, 4) f32.
    x = x_ref[...].astype(jnp.bfloat16)

    # fc1 + ReLU  (bf16 MXU matmul, f32 accumulate, f32 bias/activation)
    h1 = jnp.dot(x, w1_ref[...], preferred_element_type=jnp.float32) + b1_ref[...]
    h1 = jnp.maximum(h1, 0.0)                                  # (TB, 16) f32

    # fc2 + ReLU
    h2 = jnp.dot(h1.astype(jnp.bfloat16), w2_ref[...],
                 preferred_element_type=jnp.float32) + b2_ref[...]
    h2 = jnp.maximum(h2, 0.0)                                  # (TB, 8) f32

    # fc3 + sigmoid on the real 4 columns only.
    z = jnp.dot(h2.astype(jnp.bfloat16), w3_ref[...],
                preferred_element_type=jnp.float32) + b3_ref[...]
    o_ref[...] = jax.nn.sigmoid(z).astype(o_ref.dtype)         # (TB, 4) f32


def mlp_forward(x, kernel_params, *, tb=8192):
    """x: (B, 7) float32.  kernel_params from prepare_params().  Returns (B, 4) f32."""
    w1, b1, w2, b2, w3, b3 = kernel_params
    B = x.shape[0]

    # Block rows: whole batch if it fits in one tile (block dim == full array
    # dim is always legal), otherwise tb (multiple of 8; edge block masked).
    tb_eff = B if B <= tb else tb
    grid = (pl.cdiv(B, tb_eff),)

    def resident(shape):
        # Whole-array block, same block every grid step -> stays in VMEM.
        return pl.BlockSpec(shape, lambda i: (0, 0))

    flops = 2 * B * (IN_F * H1 + H1 * H2 + H2 * OUT_F)
    bytes_accessed = (4 * B * IN_F                       # f32 x in
                      + 4 * B * OUT_F                    # f32 out
                      + 2 * (IN_F * H1 + H1 * H2 + H2 * OUT_F)   # bf16 weights
                      + 4 * (H1 + H2 + OUT_F))                    # f32 biases

    out = pl.pallas_call(
        mlp_kernel,
        out_shape=jax.ShapeDtypeStruct((B, OUT_F), jnp.float32),
        grid=grid,
        in_specs=[
            pl.BlockSpec((tb_eff, IN_F), lambda i: (i, 0)),  # x: tiled over batch
            resident((IN_F, H1)),                            # w1
            resident((1, H1)),                               # b1
            resident((H1, H2)),                              # w2
            resident((1, H2)),                               # b2
            resident((H2, OUT_F)),                           # w3
            resident((1, OUT_F)),                            # b3
        ],
        out_specs=pl.BlockSpec((tb_eff, OUT_F), lambda i: (i, 0)),
        compiler_params=pltpu.CompilerParams(
            dimension_semantics=("parallel",),
            vmem_limit_bytes=64 * 1024 * 1024),
        cost_estimate=pl.CostEstimate(
            flops=flops,
            transcendentals=B * OUT_F,
            bytes_accessed=bytes_accessed),
    )(x, w1, b1, w2, b2, w3, b3)

    return out


def init_params(key):
    """Deterministic init mimicking nn.Linear's U(-1/sqrt(fan_in), 1/sqrt(fan_in))."""
    def linear(key, fan_in, fan_out):
        kw, kb = jax.random.split(key)
        bound = 1.0 / jnp.sqrt(fan_in)
        # Stored as (in, out) so the kernel computes x @ W + b.
        w = jax.random.uniform(kw, (fan_in, fan_out), jnp.float32, -bound, bound)
        b = jax.random.uniform(kb, (1, fan_out), jnp.float32, -bound, bound)
        return w, b

    k1, k2, k3 = jax.random.split(key, 3)
    w1, b1 = linear(k1, IN_F, H1)
    w2, b2 = linear(k2, H1, H2)
    w3, b3 = linear(k3, H2, OUT_F)
    return (w1, b1, w2, b2, w3, b3)


def prepare_params(params):
    """One-time kernel layout prep: weights -> bf16, biases stay f32 (1, N)."""
    w1, b1, w2, b2, w3, b3 = params
    return (w1.astype(jnp.bfloat16), b1,
            w2.astype(jnp.bfloat16), b2,
            w3.astype(jnp.bfloat16), b3)


def mlp_reference(x, params):
    """Pure-JAX f32 reference for correctness checking."""
    w1, b1, w2, b2, w3, b3 = params
    h1 = jnp.maximum(x @ w1 + b1, 0.0)
    h2 = jnp.maximum(h1 @ w2 + b2, 0.0)
    return jax.nn.sigmoid(h2 @ w3 + b3)


if __name__ == "__main__":
    key = jax.random.PRNGKey(0)
    kx, kp = jax.random.split(key)
    params = init_params(kp)
    kparams = prepare_params(params)   # hoisted one-time weight cast

    # Small, spec-consistent input (single grid step).
    batch = 8
    x = jax.random.normal(kx, (batch, IN_F), dtype=jnp.float32)
    out = jax.block_until_ready(mlp_forward(x, kparams))
    ref = mlp_reference(x, params)
    assert out.shape == (batch, OUT_F), out.shape
    # bf16 operands / f32 accumulation: loosen tolerance vs the f32 reference.
    assert jnp.allclose(out, ref, atol=3e-2, rtol=3e-2), "mismatch vs reference (small)"

    # Larger batch, single big tile (tb clamp path).
    batch2 = 1000
    x2 = jax.random.normal(kx, (batch2, IN_F), dtype=jnp.float32)
    out2 = jax.block_until_ready(mlp_forward(x2, kparams))
    ref2 = mlp_reference(x2, params)
    assert out2.shape == (batch2, OUT_F), out2.shape
    assert jnp.allclose(out2, ref2, atol=3e-2, rtol=3e-2), "mismatch vs reference (large)"

    # Multi-step grid with a masked edge block (1000 rows, tb=256 -> 4 steps).
    out3 = jax.block_until_ready(mlp_forward(x2, kparams, tb=256))
    assert out3.shape == (batch2, OUT_F), out3.shape
    assert jnp.allclose(out3, ref2, atol=3e-2, rtol=3e-2), "mismatch vs reference (grid)"

    print("KERNEL_OK")
</pallas_src>

<mosaic_0001>
module attributes {stable_mosaic.version = 11 : i64} {
  func.func @mlp_kernel(%arg0: i32, %arg1: memref<8x7xf32, #tpu.memory_space<vmem>>, %arg2: memref<7x16xbf16, #tpu.memory_space<vmem>>, %arg3: memref<1x16xf32, #tpu.memory_space<vmem>>, %arg4: memref<16x8xbf16, #tpu.memory_space<vmem>>, %arg5: memref<1x8xf32, #tpu.memory_space<vmem>>, %arg6: memref<8x4xbf16, #tpu.memory_space<vmem>>, %arg7: memref<1x4xf32, #tpu.memory_space<vmem>>, %arg8: memref<8x4xf32, #tpu.memory_space<vmem>>) attributes {dimension_semantics = [#tpu.dimension_semantics<parallel>], iteration_bounds = array<i64: 1>, scalar_prefetch = 0 : i64, scratch_operands = 0 : i64, tpu.core_type = #tpu.core_type<tc>, window_params = [{transform_indices = @transform_0, window_bounds = array<i64: 8, 7>}, {pipeline_mode = #tpu.pipeline_mode<synchronous>, transform_indices = @transform_1, window_bounds = array<i64: 7, 16>}, {pipeline_mode = #tpu.pipeline_mode<synchronous>, transform_indices = @transform_2, window_bounds = array<i64: 1, 16>}, {pipeline_mode = #tpu.pipeline_mode<synchronous>, transform_indices = @transform_3, window_bounds = array<i64: 16, 8>}, {pipeline_mode = #tpu.pipeline_mode<synchronous>, transform_indices = @transform_4, window_bounds = array<i64: 1, 8>}, {pipeline_mode = #tpu.pipeline_mode<synchronous>, transform_indices = @transform_5, window_bounds = array<i64: 8, 4>}, {pipeline_mode = #tpu.pipeline_mode<synchronous>, transform_indices = @transform_6, window_bounds = array<i64: 1, 4>}, {transform_indices = @transform_7, window_bounds = array<i64: 8, 4>}]} {
    %c0 = arith.constant 0 : index
    %c0_0 = arith.constant 0 : index
    %0 = vector.load %arg1[%c0, %c0_0] : memref<8x7xf32, #tpu.memory_space<vmem>>, vector<8x7xf32>
    %1 = arith.truncf %0 : vector<8x7xf32> to vector<8x7xbf16>
    %c0_1 = arith.constant 0 : index
    %c0_2 = arith.constant 0 : index
    %2 = vector.load %arg2[%c0_1, %c0_2] : memref<7x16xbf16, #tpu.memory_space<vmem>>, vector<7x16xbf16>
    %cst = arith.constant dense<0.000000e+00> : vector<8x16xf32>
    %3 = tpu.matmul %1, %2, %cst {dimension_numbers = #tpu.dot_dimension_numbers<[1], [0], [0], [1], [0, 0, 1, 1], [], []>} : vector<8x7xbf16>, vector<7x16xbf16>, vector<8x16xf32> -> vector<8x16xf32>
    %c0_3 = arith.constant 0 : index
    %c0_4 = arith.constant 0 : index
    %4 = vector.load %arg3[%c0_3, %c0_4] : memref<1x16xf32, #tpu.memory_space<vmem>>, vector<1x16xf32>
    %5 = vector.broadcast %4 : vector<1x16xf32> to vector<8x16xf32>
    %6 = arith.addf %3, %5 : vector<8x16xf32>
    %cst_5 = arith.constant 0.000000e+00 : f32
    %7 = vector.broadcast %cst_5 : f32 to vector<8x16xf32>
    %8 = arith.maximumf %6, %7 : vector<8x16xf32>
    %9 = arith.truncf %8 : vector<8x16xf32> to vector<8x16xbf16>
    %c0_6 = arith.constant 0 : index
    %c0_7 = arith.constant 0 : index
    %10 = vector.load %arg4[%c0_6, %c0_7] : memref<16x8xbf16, #tpu.memory_space<vmem>>, vector<16x8xbf16>
    %cst_8 = arith.constant dense<0.000000e+00> : vector<8x8xf32>
    %11 = tpu.matmul %9, %10, %cst_8 {dimension_numbers = #tpu.dot_dimension_numbers<[1], [0], [0], [1], [0, 0, 1, 1], [], []>} : vector<8x16xbf16>, vector<16x8xbf16>, vector<8x8xf32> -> vector<8x8xf32>
    %c0_9 = arith.constant 0 : index
    %c0_10 = arith.constant 0 : index
    %12 = vector.load %arg5[%c0_9, %c0_10] : memref<1x8xf32, #tpu.memory_space<vmem>>, vector<1x8xf32>
    %13 = vector.broadcast %12 : vector<1x8xf32> to vector<8x8xf32>
    %14 = arith.addf %11, %13 : vector<8x8xf32>
    %cst_11 = arith.constant 0.000000e+00 : f32
    %15 = vector.broadcast %cst_11 : f32 to vector<8x8xf32>
    %16 = arith.maximumf %14, %15 : vector<8x8xf32>
    %17 = arith.truncf %16 : vector<8x8xf32> to vector<8x8xbf16>
    %c0_12 = arith.constant 0 : index
    %c0_13 = arith.constant 0 : index
    %18 = vector.load %arg6[%c0_12, %c0_13] : memref<8x4xbf16, #tpu.memory_space<vmem>>, vector<8x4xbf16>
    %cst_14 = arith.constant dense<0.000000e+00> : vector<8x4xf32>
    %19 = tpu.matmul %17, %18, %cst_14 {dimension_numbers = #tpu.dot_dimension_numbers<[1], [0], [0], [1], [0, 0, 1, 1], [], []>} : vector<8x8xbf16>, vector<8x4xbf16>, vector<8x4xf32> -> vector<8x4xf32>
    %c0_15 = arith.constant 0 : index
    %c0_16 = arith.constant 0 : index
    %20 = vector.load %arg7[%c0_15, %c0_16] : memref<1x4xf32, #tpu.memory_space<vmem>>, vector<1x4xf32>
    %21 = vector.broadcast %20 : vector<1x4xf32> to vector<8x4xf32>
    %22 = arith.addf %19, %21 : vector<8x4xf32>
    %23 = arith.negf %22 : vector<8x4xf32>
    %24 = math.exp %23 : vector<8x4xf32>
    %cst_17 = arith.constant 1.000000e+00 : f32
    %25 = vector.broadcast %cst_17 : f32 to vector<8x4xf32>
    %26 = arith.addf %25, %24 : vector<8x4xf32>
    %27 = arith.divf %25, %26 : vector<8x4xf32>
    %c0_18 = arith.constant 0 : index
    %c0_19 = arith.constant 0 : index
    %28 = vector.load %arg8[%c0_18, %c0_19] : memref<8x4xf32, #tpu.memory_space<vmem>>, vector<8x4xf32>
    tpu.vector_store %arg8[%c0_18, %c0_19], %27 {strides = array<i32>} : memref<8x4xf32, #tpu.memory_space<vmem>>, vector<8x4xf32>,
    return
  }
  func.func @transform_0(%arg0: i32) -> (i32, i32) {
    %c0_i32 = arith.constant 0 : i32
    %c0_i32_0 = arith.constant 0 : i32
    return %arg0, %c0_i32 : i32, i32
  }
  func.func @transform_1(%arg0: i32) -> (i32, i32) {
    %c0_i32 = arith.constant 0 : i32
    %c0_i32_0 = arith.constant 0 : i32
    %c0_i32_1 = arith.constant 0 : i32
    return %c0_i32, %c0_i32_0 : i32, i32
  }
  func.func @transform_2(%arg0: i32) -> (i32, i32) {
    %c0_i32 = arith.constant 0 : i32
    %c0_i32_0 = arith.constant 0 : i32
    %c0_i32_1 = arith.constant 0 : i32
    return %c0_i32, %c0_i32_0 : i32, i32
  }
  func.func @transform_3(%arg0: i32) -> (i32, i32) {
    %c0_i32 = arith.constant 0 : i32
    %c0_i32_0 = arith.constant 0 : i32
    %c0_i32_1 = arith.constant 0 : i32
    return %c0_i32, %c0_i32_0 : i32, i32
  }
  func.func @transform_4(%arg0: i32) -> (i32, i32) {
    %c0_i32 = arith.constant 0 : i32
    %c0_i32_0 = arith.constant 0 : i32
    %c0_i32_1 = arith.constant 0 : i32
    return %c0_i32, %c0_i32_0 : i32, i32
  }
  func.func @transform_5(%arg0: i32) -> (i32, i32) {
    %c0_i32 = arith.constant 0 : i32
    %c0_i32_0 = arith.constant 0 : i32
    %c0_i32_1 = arith.constant 0 : i32
    return %c0_i32, %c0_i32_0 : i32, i32
  }
  func.func @transform_6(%arg0: i32) -> (i32, i32) {
    %c0_i32 = arith.constant 0 : i32
    %c0_i32_0 = arith.constant 0 : i32
    %c0_i32_1 = arith.constant 0 : i32
    return %c0_i32, %c0_i32_0 : i32, i32
  }
  func.func @transform_7(%arg0: i32) -> (i32, i32) {
    %c0_i32 = arith.constant 0 : i32
    %c0_i32_0 = arith.constant 0 : i32
    return %arg0, %c0_i32 : i32, i32
  }
}

</mosaic_0001>

<llo_original>
// kernel: tpu_custom_call.1
$region0: #{tpu_custom_call.1}
  #allocation0 [shape = 'u32[]', space=smem, size = 0x4, offset = 0x4, fixed_abs, tag = 'smem constant byte address 0x4 - core index']
  #allocation1 [shape = 'u32[72,128]{1,0:T(1,128)}', space=vmem, size = 0x9000, scoped, tag = 'internal scratch']
  %s0 = inlined_call_operand.vmem [shape: f32[8,7], index: 0, kind: input, shape index: {}]
  %s1 = inlined_call_operand.vmem [shape: bf16[7,16], index: 1, kind: input, shape index: {}]
  %s2 = inlined_call_operand.vmem [shape: f32[1,16], index: 2, kind: input, shape index: {}]
  %s3 = inlined_call_operand.vmem [shape: bf16[16,8], index: 3, kind: input, shape index: {}]
  %s4 = inlined_call_operand.vmem [shape: f32[1,8], index: 4, kind: input, shape index: {}]
  %s5 = inlined_call_operand.vmem [shape: bf16[8,4], index: 5, kind: input, shape index: {}]
  %s6 = inlined_call_operand.vmem [shape: f32[1,4], index: 6, kind: input, shape index: {}]
  %s7 = inlined_call_operand.vmem [shape: f32[8,4], index: 7, kind: output, shape index: {}]
  %s8 = sld [smem:[#allocation0]]
  $region38: #{tpu_custom_call.1} parent=0
    _
  %s10 = ssub.s32 1, %s8
  %s11 = scalar_select 0, %s10, %s8
  // Predicated region
  $region2: #{tpu_custom_call.1} parent=0 // pred_check
    _
  $region3: #{tpu_custom_call.1} parent=0 // pred_check_branch
    %13 = sbr.rel (0) target = $region5
  $region4: #{tpu_custom_call.1} parent=0 // pred_region
    _
  $region5: #{tpu_custom_call.1} parent=0 // pred_fallthru
    _
  // Predicated region
  $region6: #{tpu_custom_call.1} parent=0 // pred_check
    _
  $region7: #{tpu_custom_call.1} parent=0 // pred_check_branch
    %15 = sbr.rel (0) target = $region9
  $region8: #{tpu_custom_call.1} parent=0 // pred_region
    _
  $region9: #{tpu_custom_call.1} parent=0 // pred_fallthru
    _
  // Predicated region
  $region10: #{tpu_custom_call.1} parent=0 // pred_check
    _
  $region11: #{tpu_custom_call.1} parent=0 // pred_check_branch
    %17 = sbr.rel (0) target = $region13
  $region12: #{tpu_custom_call.1} parent=0 // pred_region
    _
  $region13: #{tpu_custom_call.1} parent=0 // pred_fallthru
    _
  // Predicated region
  $region14: #{tpu_custom_call.1} parent=0 // pred_check
    _
  $region15: #{tpu_custom_call.1} parent=0 // pred_check_branch
    %19 = sbr.rel (0) target = $region17
  $region16: #{tpu_custom_call.1} parent=0 // pred_region
    _
  $region17: #{tpu_custom_call.1} parent=0 // pred_fallthru
    _
  // Predicated region
  $region18: #{tpu_custom_call.1} parent=0 // pred_check
    _
  $region19: #{tpu_custom_call.1} parent=0 // pred_check_branch
    %21 = sbr.rel (0) target = $region21
  $region20: #{tpu_custom_call.1} parent=0 // pred_region
    _
  $region21: #{tpu_custom_call.1} parent=0 // pred_fallthru
    _
  // Predicated region
  $region22: #{tpu_custom_call.1} parent=0 // pred_check
    _
  $region23: #{tpu_custom_call.1} parent=0 // pred_check_branch
    %23 = sbr.rel (0) target = $region25
  $region24: #{tpu_custom_call.1} parent=0 // pred_region
    _
  $region25: #{tpu_custom_call.1} parent=0 // pred_fallthru
    _
  // Predicated region
  $region26: #{tpu_custom_call.1} parent=0 // pred_check
    _
  $region27: #{tpu_custom_call.1} parent=0 // pred_check_branch
    %25 = sbr.rel (0) target = $region29
  $region28: #{tpu_custom_call.1} parent=0 // pred_region
    _
  $region29: #{tpu_custom_call.1} parent=0 // pred_fallthru
    _
  %v27 = vld [vmem:[%s0] sm:$0xff]
  %v28 = vpack.c.bf16 %v27, %v27
  %v29 = vld [vmem:[%s1] sm:$0xf]
  %v30 = vld [vmem:[%s2] sm:$0x1]
  %v32 = vperm.slane %v30, 0
  %vm34 = vcmask 56320
  %v36 = vsel %vm34, %v28, 0
  %vm38 = vcmask 1042432
  %vm39 = vcmask 1043456
  %v40 = vsel %vm38, 4294967295, 65535
  %v41 = vsel %vm39, %v40, 0
  %v43 = vand.u32 %v29, %v41
  %45 = vmatpush.bf16.msra.mxu0 0
  %46 = vmatpush.bf16.msra.mxu0 0
  %47 = vmatpush.bf16.msra.mxu0 0
  %48 = vmatpush.bf16.msra.mxu0 0
  %49 = vmatpush.bf16.msra.mxu0 0
  %50 = vmatpush.bf16.msra.mxu0 0
  %51 = vmatpush.bf16.msra.mxu0 0
  %52 = vmatpush.bf16.msra.mxu0 %v43
  %53 = vmatmul.bf16.gmra.mxu0 %v36
  %v54 = vpop.f32.mrf.mxu0
  %v55 = vadd.f32 %v32, %v54
  %v56 = vpop.f32.mrf.mxu0
  %57 = vdwg.mxu0
  %v58 = vmax.f32 %v55, 0.0
  %v59 = vpack.c.bf16 %v58, %v58
  %v60 = vld [vmem:[%s3] sm:$0xf]
  %v61 = vld [vmem:[%s3 + $0x4] sm:$0xf]
  %v62 = vld [vmem:[%s4] sm:$0x1]
  %v64 = vperm.slane %v62, 0
  %v68 = vunpack.c.l.b16 %v60
  %v69 = vunpack.c.l.b16 %v61
  %v70 = vpack.c.b16 %v69, %v68
  %vm72 = vcmask 130048
  %v74 = vsel %vm72, %v59, 0
  %76 = vmatpush.bf16.msra.mxu0 0
  %77 = vmatpush.bf16.msra.mxu0 0
  %78 = vmatpush.bf16.msra.mxu0 0
  %79 = vmatpush.bf16.msra.mxu0 0
  %80 = vmatpush.bf16.msra.mxu0 0
  %81 = vmatpush.bf16.msra.mxu0 0
  %82 = vmatpush.bf16.msra.mxu0 0
  %83 = vmatpush.bf16.msra.mxu0 %v70
  %84 = vmatmul.bf16.gmra.mxu0 %v74
  %v85 = vpop.f32.mrf.mxu0
  %v86 = vadd.f32 %v64, %v85
  %v87 = vpop.f32.mrf.mxu0
  %88 = vdwg.mxu0
  %v89 = vmax.f32 %v86, 0.0
  %v90 = vpack.c.bf16 %v89, %v89
  %v91 = vld [vmem:[%s5] sm:$0xf]
  %v92 = vld [vmem:[%s6] sm:$0x1]
  %v94 = vperm.slane %v92, 0
  %vm96 = vcmask 64512
  %v98 = vsel %vm96, %v90, 0
  %v101 = vsel %vm39, %v91, 0
  %103 = vmatpush.bf16.msra.mxu0 0
  %104 = vmatpush.bf16.msra.mxu0 0
  %105 = vmatpush.bf16.msra.mxu0 0
  %106 = vmatpush.bf16.msra.mxu0 0
  %107 = vmatpush.bf16.msra.mxu0 0
  %108 = vmatpush.bf16.msra.mxu0 0
  %109 = vmatpush.bf16.msra.mxu0 0
  %110 = vmatpush.bf16.msra.mxu0 %v101
  %111 = vmatmul.bf16.gmra.mxu0 %v98
  %v112 = vpop.f32.mrf.mxu0
  %v113 = vadd.f32 %v94, %v112
  %v114 = vpop.f32.mrf.mxu0
  %115 = vdwg.mxu0
  %v116 = vxor.u32 %v113, 2147483648
  %v117 = vmul.f32 %v116, 1.442695
  %v118 = vpow.pop %v117
  %v119 = vadd.f32 %v118, 1.0
  %v120 = vrcp.pop %v119
  %v121 = vmul.f32 %v119, %v120
  %v122 = vsub.f32 1.0, %v121
  %v123 = vmul.f32 %v120, %v122
  %v124 = vadd.f32 %v120, %v123
  %vm125 = vweird.f32 %v119
  %vm126 = vweird.f32 %v120
  %vm127 = vmor %vm125, %vm126
  %v128 = vsel %vm127, %v120, %v124
  %v129 = vand.u32 2147483647, %v119
  %vm130 = vcmp.eq.f32.partialorder %v129, 8.507059e+37
  %v131 = vand.u32 %v119, 2147483648
  %v132 = vor.u32 1.1754944e-38, %v131
  %v133 = vsel %vm130, %v132, %v128
  %v134 = vmul.f32 1.0, %v133
  %vm135 = vcmask 31744
  %136 = vst.msk [vmem:[%s7] sm:$0xff] %vm135, %v134
  // Predicated region
  $region30: #{tpu_custom_call.1} parent=0 // pred_check
    _
  $region31: #{tpu_custom_call.1} parent=0 // pred_check_branch
    %138 = sbr.rel (0) target = $region33
  $region32: #{tpu_custom_call.1} parent=0 // pred_region
    _
  $region33: #{tpu_custom_call.1} parent=0 // pred_fallthru
    _
  // Predicated region
  $region34: #{tpu_custom_call.1} parent=0 // pred_check
    _
  $region35: #{tpu_custom_call.1} parent=0 // pred_check_branch
    %140 = sbr.rel (0) target = $region37
  $region36: #{tpu_custom_call.1} parent=0 // pred_region
    _
  $region37: #{tpu_custom_call.1} parent=0 // pred_fallthru
    _

</llo_original>
